<compile_context>
chip_gen: v5e
topology: v5e:2x2
jax: 0.10.0
libtpu: 0.0.40
codegen_flags: <defaults>
</compile_context>

<pallas_src>
import numpy as np
import jax
import jax.numpy as jnp
from jax.experimental import pallas as pl
from jax.experimental.pallas import tpu as pltpu

# ReLU is applied after layers 0,1 (halfadder1 or_and / or_not), 3,4 (halfadder2
# or_and / or_not) and 6 (linear_or1); NOT after the half_adder_final layers
# (2, 5) or linear_or2 (7) — exactly the PyTorch forward.
_RELU_AFTER = (True, True, False, True, True, False, True, False)
_NUM_LAYERS = 8
_LANE = 128


# ----------------------------------------------------------------------------
# Parameter construction (deterministic, mirrors HalfAdder / FullAdder __init__)
# ----------------------------------------------------------------------------
def _half_adder_layers(d_in, i, j):
    # linear_or_and
    w1 = np.eye(d_in, dtype=np.float32); b1 = np.zeros(d_in, dtype=np.float32)
    w1[i, j] = 1.0; b1[i] = -1.0
    w1[j, i] = -1.0; w1[j, j] = -1.0; b1[j] = 1.0
    # linear_or_not
    w2 = np.eye(d_in, dtype=np.float32); b2 = np.zeros(d_in, dtype=np.float32)
    w2[i, i] = -1.0; b2[i] = 1.0
    w2[j, j] = -1.0; b2[j] = 1.0
    # half_adder_final
    w3 = np.eye(d_in, dtype=np.float32); b3 = np.zeros(d_in, dtype=np.float32)
    w3[i, i] = 1.0; w3[i, j] = 1.0; b3[i] = -1.0
    w3[j, i] = -1.0; w3[j, j] = 0.0; b3[j] = 1.0
    return [(w1, b1), (w2, b2), (w3, b3)]


def build_fulladder_layers(d_in, i, j, k):
    """Returns the 8 (W, b) pairs, in forward order. y = x @ W.T + b per layer."""
    layers = []
    layers += _half_adder_layers(d_in, i, j)          # halfadder1
    layers += _half_adder_layers(d_in, i, k)          # halfadder2
    w7 = np.eye(d_in, dtype=np.float32); b7 = np.zeros(d_in, dtype=np.float32)
    w7[k, j] = -1.0; w7[k, k] = -1.0; b7[k] = 1.0     # linear_or1
    w8 = np.eye(d_in, dtype=np.float32); b8 = np.zeros(d_in, dtype=np.float32)
    w8[k, k] = -1.0; b8[k] = 1.0                      # linear_or2
    layers += [(w7, b7), (w8, b8)]
    return layers


def pack_fulladder_params(layers, d_in):
    """Pack the 8 layers into one lane-padded stack of transposed weights with
    the bias folded in via a constant-1 lane at index dp-1."""
    dp = -(-(d_in + 1) // _LANE) * _LANE              # room for const lane, pad to 128
    const = dp - 1
    wt = np.zeros((_NUM_LAYERS, dp, dp), dtype=np.float32)
    for l, (w, b) in enumerate(layers):
        wt[l, :d_in, :d_in] = w.T                     # x @ W.T part
        wt[l, const, :d_in] = b                       # bias row (picked up by const lane)
        wt[l, const, const] = 1.0                     # keep the constant-1 lane alive
    return jnp.asarray(wt)


# ----------------------------------------------------------------------------
# Pallas kernel: fused 8-layer chain (matmuls on the MXU, ReLU on the VPU)
# ----------------------------------------------------------------------------
def fulladder_kernel(x_ref, w_ref, o_ref):
    h = x_ref[...]                                    # (TILE_B, dp)
    for l, do_relu in enumerate(_RELU_AFTER):         # static unroll, 8 layers
        h = jnp.dot(h, w_ref[l], preferred_element_type=jnp.float32)
        if do_relu:
            h = jnp.maximum(h, 0.0)                   # ReLU(1)=1 keeps const lane
    o_ref[...] = h.astype(o_ref.dtype)


def fulladder_forward(x, wt_packed, d_in):
    """x: (B, d_in) float32.  wt_packed: (8, dp, dp) from pack_fulladder_params."""
    B = x.shape[0]
    dp = wt_packed.shape[-1]
    const = dp - 1

    # Batch tiling: single lane-dense tile for small B, 256-row tiles for big B.
    if B <= 512:
        bp = max(8, -(-B // 8) * 8)
        tile_b = bp
    else:
        tile_b = 256
        bp = -(-B // tile_b) * tile_b

    xp = jnp.zeros((bp, dp), dtype=jnp.float32)
    xp = xp.at[:B, :d_in].set(x.astype(jnp.float32))
    xp = xp.at[:, const].set(1.0)                     # constant-1 lane (folded bias)

    out = pl.pallas_call(
        fulladder_kernel,
        out_shape=jax.ShapeDtypeStruct((bp, dp), jnp.float32),
        grid=(bp // tile_b,),
        in_specs=[
            pl.BlockSpec((tile_b, dp), lambda i: (i, 0)),
            pl.BlockSpec((_NUM_LAYERS, dp, dp), lambda i: (0, 0, 0)),  # resident weights
        ],
        out_specs=pl.BlockSpec((tile_b, dp), lambda i: (i, 0)),
        compiler_params=pltpu.CompilerParams(dimension_semantics=("parallel",)),
    )(xp, wt_packed)

    return out[:B, :d_in].astype(x.dtype)


# ----------------------------------------------------------------------------
# Main: build FullAdder params, run the kernel, validate against pure-JAX ref
# ----------------------------------------------------------------------------
if __name__ == "__main__":
    d_in, i, j, k = 16, 2, 5, 9
    batch = 8

    layers = build_fulladder_layers(d_in, i, j, k)
    wt_packed = pack_fulladder_params(layers, d_in)   # built once, reused per call

    key = jax.random.PRNGKey(0)
    x = jax.random.normal(key, (batch, d_in), dtype=jnp.float32)

    out = jax.block_until_ready(fulladder_forward(x, wt_packed, d_in))

    # Pure-JAX reference: identical math to the PyTorch FullAdder.forward
    h = x
    for (w, b), do_relu in zip(layers, _RELU_AFTER):
        h = h @ jnp.asarray(w).T + jnp.asarray(b)
        if do_relu:
            h = jnp.maximum(h, 0.0)
    np.testing.assert_allclose(np.asarray(out), np.asarray(h), rtol=1e-5, atol=1e-5)

    print("KERNEL_OK")
</pallas_src>

<mosaic_0001>
module attributes {stable_mosaic.version = 11 : i64} {
  func.func @fulladder_kernel(%arg0: i32, %arg1: memref<8x128xf32, #tpu.memory_space<vmem>>, %arg2: memref<8x128x128xf32, #tpu.memory_space<vmem>>, %arg3: memref<8x128xf32, #tpu.memory_space<vmem>>) attributes {dimension_semantics = [#tpu.dimension_semantics<parallel>], iteration_bounds = array<i64: 1>, scalar_prefetch = 0 : i64, scratch_operands = 0 : i64, tpu.core_type = #tpu.core_type<tc>, window_params = [{transform_indices = @transform_0, window_bounds = array<i64: 8, 128>}, {pipeline_mode = #tpu.pipeline_mode<synchronous>, transform_indices = @transform_1, window_bounds = array<i64: 8, 128, 128>}, {transform_indices = @transform_2, window_bounds = array<i64: 8, 128>}]} {
    %c0 = arith.constant 0 : index
    %c0_0 = arith.constant 0 : index
    %0 = vector.load %arg1[%c0, %c0_0] : memref<8x128xf32, #tpu.memory_space<vmem>>, vector<8x128xf32>
    %c0_1 = arith.constant 0 : index
    %c0_2 = arith.constant 0 : index
    %c0_3 = arith.constant 0 : index
    %1 = vector.load %arg2[%c0_1, %c0_2, %c0_3] : memref<8x128x128xf32, #tpu.memory_space<vmem>>, vector<1x128x128xf32>
    %2 = vector.shape_cast %1 : vector<1x128x128xf32> to vector<128x128xf32>
    %cst = arith.constant dense<0.000000e+00> : vector<8x128xf32>
    %3 = tpu.matmul %0, %2, %cst {dimension_numbers = #tpu.dot_dimension_numbers<[1], [0], [0], [1], [0, 0, 1, 1], [], []>} : vector<8x128xf32>, vector<128x128xf32>, vector<8x128xf32> -> vector<8x128xf32>
    %cst_4 = arith.constant 0.000000e+00 : f32
    %4 = vector.broadcast %cst_4 : f32 to vector<8x128xf32>
    %5 = arith.maximumf %3, %4 : vector<8x128xf32>
    %c1 = arith.constant 1 : index
    %c0_5 = arith.constant 0 : index
    %c0_6 = arith.constant 0 : index
    %6 = vector.load %arg2[%c1, %c0_5, %c0_6] : memref<8x128x128xf32, #tpu.memory_space<vmem>>, vector<1x128x128xf32>
    %7 = vector.shape_cast %6 : vector<1x128x128xf32> to vector<128x128xf32>
    %cst_7 = arith.constant dense<0.000000e+00> : vector<8x128xf32>
    %8 = tpu.matmul %5, %7, %cst_7 {dimension_numbers = #tpu.dot_dimension_numbers<[1], [0], [0], [1], [0, 0, 1, 1], [], []>} : vector<8x128xf32>, vector<128x128xf32>, vector<8x128xf32> -> vector<8x128xf32>
    %cst_8 = arith.constant 0.000000e+00 : f32
    %9 = vector.broadcast %cst_8 : f32 to vector<8x128xf32>
    %10 = arith.maximumf %8, %9 : vector<8x128xf32>
    %c2 = arith.constant 2 : index
    %c0_9 = arith.constant 0 : index
    %c0_10 = arith.constant 0 : index
    %11 = vector.load %arg2[%c2, %c0_9, %c0_10] : memref<8x128x128xf32, #tpu.memory_space<vmem>>, vector<1x128x128xf32>
    %12 = vector.shape_cast %11 : vector<1x128x128xf32> to vector<128x128xf32>
    %cst_11 = arith.constant dense<0.000000e+00> : vector<8x128xf32>
    %13 = tpu.matmul %10, %12, %cst_11 {dimension_numbers = #tpu.dot_dimension_numbers<[1], [0], [0], [1], [0, 0, 1, 1], [], []>} : vector<8x128xf32>, vector<128x128xf32>, vector<8x128xf32> -> vector<8x128xf32>
    %c3 = arith.constant 3 : index
    %c0_12 = arith.constant 0 : index
    %c0_13 = arith.constant 0 : index
    %14 = vector.load %arg2[%c3, %c0_12, %c0_13] : memref<8x128x128xf32, #tpu.memory_space<vmem>>, vector<1x128x128xf32>
    %15 = vector.shape_cast %14 : vector<1x128x128xf32> to vector<128x128xf32>
    %cst_14 = arith.constant dense<0.000000e+00> : vector<8x128xf32>
    %16 = tpu.matmul %13, %15, %cst_14 {dimension_numbers = #tpu.dot_dimension_numbers<[1], [0], [0], [1], [0, 0, 1, 1], [], []>} : vector<8x128xf32>, vector<128x128xf32>, vector<8x128xf32> -> vector<8x128xf32>
    %cst_15 = arith.constant 0.000000e+00 : f32
    %17 = vector.broadcast %cst_15 : f32 to vector<8x128xf32>
    %18 = arith.maximumf %16, %17 : vector<8x128xf32>
    %c4 = arith.constant 4 : index
    %c0_16 = arith.constant 0 : index
    %c0_17 = arith.constant 0 : index
    %19 = vector.load %arg2[%c4, %c0_16, %c0_17] : memref<8x128x128xf32, #tpu.memory_space<vmem>>, vector<1x128x128xf32>
    %20 = vector.shape_cast %19 : vector<1x128x128xf32> to vector<128x128xf32>
    %cst_18 = arith.constant dense<0.000000e+00> : vector<8x128xf32>
    %21 = tpu.matmul %18, %20, %cst_18 {dimension_numbers = #tpu.dot_dimension_numbers<[1], [0], [0], [1], [0, 0, 1, 1], [], []>} : vector<8x128xf32>, vector<128x128xf32>, vector<8x128xf32> -> vector<8x128xf32>
    %cst_19 = arith.constant 0.000000e+00 : f32
    %22 = vector.broadcast %cst_19 : f32 to vector<8x128xf32>
    %23 = arith.maximumf %21, %22 : vector<8x128xf32>
    %c5 = arith.constant 5 : index
    %c0_20 = arith.constant 0 : index
    %c0_21 = arith.constant 0 : index
    %24 = vector.load %arg2[%c5, %c0_20, %c0_21] : memref<8x128x128xf32, #tpu.memory_space<vmem>>, vector<1x128x128xf32>
    %25 = vector.shape_cast %24 : vector<1x128x128xf32> to vector<128x128xf32>
    %cst_22 = arith.constant dense<0.000000e+00> : vector<8x128xf32>
    %26 = tpu.matmul %23, %25, %cst_22 {dimension_numbers = #tpu.dot_dimension_numbers<[1], [0], [0], [1], [0, 0, 1, 1], [], []>} : vector<8x128xf32>, vector<128x128xf32>, vector<8x128xf32> -> vector<8x128xf32>
    %c6 = arith.constant 6 : index
    %c0_23 = arith.constant 0 : index
    %c0_24 = arith.constant 0 : index
    %27 = vector.load %arg2[%c6, %c0_23, %c0_24] : memref<8x128x128xf32, #tpu.memory_space<vmem>>, vector<1x128x128xf32>
    %28 = vector.shape_cast %27 : vector<1x128x128xf32> to vector<128x128xf32>
    %cst_25 = arith.constant dense<0.000000e+00> : vector<8x128xf32>
    %29 = tpu.matmul %26, %28, %cst_25 {dimension_numbers = #tpu.dot_dimension_numbers<[1], [0], [0], [1], [0, 0, 1, 1], [], []>} : vector<8x128xf32>, vector<128x128xf32>, vector<8x128xf32> -> vector<8x128xf32>
    %cst_26 = arith.constant 0.000000e+00 : f32
    %30 = vector.broadcast %cst_26 : f32 to vector<8x128xf32>
    %31 = arith.maximumf %29, %30 : vector<8x128xf32>
    %c7 = arith.constant 7 : index
    %c0_27 = arith.constant 0 : index
    %c0_28 = arith.constant 0 : index
    %32 = vector.load %arg2[%c7, %c0_27, %c0_28] : memref<8x128x128xf32, #tpu.memory_space<vmem>>, vector<1x128x128xf32>
    %33 = vector.shape_cast %32 : vector<1x128x128xf32> to vector<128x128xf32>
    %cst_29 = arith.constant dense<0.000000e+00> : vector<8x128xf32>
    %34 = tpu.matmul %31, %33, %cst_29 {dimension_numbers = #tpu.dot_dimension_numbers<[1], [0], [0], [1], [0, 0, 1, 1], [], []>} : vector<8x128xf32>, vector<128x128xf32>, vector<8x128xf32> -> vector<8x128xf32>
    %c0_30 = arith.constant 0 : index
    %c0_31 = arith.constant 0 : index
    %35 = vector.load %arg3[%c0_30, %c0_31] : memref<8x128xf32, #tpu.memory_space<vmem>>, vector<8x128xf32>
    tpu.vector_store %arg3[%c0_30, %c0_31], %34 {strides = array<i32>} : memref<8x128xf32, #tpu.memory_space<vmem>>, vector<8x128xf32>,
    return
  }
  func.func @transform_0(%arg0: i32) -> (i32, i32) {
    %c0_i32 = arith.constant 0 : i32
    %c0_i32_0 = arith.constant 0 : i32
    return %arg0, %c0_i32 : i32, i32
  }
  func.func @transform_1(%arg0: i32) -> (i32, i32, i32) {
    %c0_i32 = arith.constant 0 : i32
    %c0_i32_0 = arith.constant 0 : i32
    %c0_i32_1 = arith.constant 0 : i32
    %c0_i32_2 = arith.constant 0 : i32
    return %c0_i32, %c0_i32_0, %c0_i32_1 : i32, i32, i32
  }
  func.func @transform_2(%arg0: i32) -> (i32, i32) {
    %c0_i32 = arith.constant 0 : i32
    %c0_i32_0 = arith.constant 0 : i32
    return %arg0, %c0_i32 : i32, i32
  }
}

</mosaic_0001>

<llo_original>
// kernel: tpu_custom_call.1
$region0: #{tpu_custom_call.1}
  #allocation0 [shape = 'u32[]', space=smem, size = 0x4, offset = 0x4, fixed_abs, tag = 'smem constant byte address 0x4 - core index']
  #allocation1 [shape = 'u32[72,128]{1,0:T(1,128)}', space=vmem, size = 0x9000, scoped, tag = 'internal scratch']
  %s0 = inlined_call_operand.hbm [shape: f32[8,128], index: 0, kind: input, shape index: {}]
  %s1 = inlined_call_operand.hbm [shape: f32[8,128,128], index: 1, kind: input, shape index: {}]
  %s2 = inlined_call_operand.hbm [shape: f32[8,128], index: 2, kind: output, shape index: {}]
  %s3 = sld [smem:[#allocation0]]
  $region26: #{tpu_custom_call.1} parent=0
    _
  %s5 = ssub.s32 1, %s3
  %s6 = scalar_select 0, %s5, %s3
  $region1: #{tpu_custom_call.1} parent=0
    #allocation2 [shape = 'u8[4096]{0}', space=vmem, size = 0x1000, scoped, tag = 'input window, operand 0, single buffered']
    #allocation3 [shape = 's32[1]{0}', space=sflag, size = 0x4, scoped, tag = 'scoped memory for tpu_custom_call.1']
    #allocation4 [shape = 's32[1]{0}', space=sflag, size = 0x4, scoped, tag = 'scoped memory for tpu_custom_call.1']
    #allocation5 [shape = 'u8[524288]{0}', space=vmem, size = 0x80000, scoped, tag = 'input window, operand 1, single buffered']
    #allocation6 [shape = 's32[1]{0}', space=sflag, size = 0x4, scoped, tag = 'scoped memory for tpu_custom_call.1']
    #allocation7 [shape = 'u8[4096]{0}', space=vmem, size = 0x1000, scoped, tag = 'output window, operand 0, single buffered']
    %7 = vsyncpa [#allocation3], 0
    %8 = vsyncpa [#allocation6], 0
    %9 = vsyncpa [#allocation4], 0
    // Predicated region
    $region2: #{tpu_custom_call.1} parent=1 // pred_check
      _
    $region3: #{tpu_custom_call.1} parent=1 // pred_check_branch
      %11 = sbr.rel (0) target = $region5
    $region4: #{tpu_custom_call.1} parent=1 // pred_region
      %13 = vsyncadd [#allocation3], 0
      %s15 = sshll.u32 %s0, 4
      %s16 = int_to_ptr.hbm [resolvable:$true] %s15
      %s17 = sshll.u32 [#allocation2], 4
      %s18 = int_to_ptr.vmem [resolvable:$true] %s17
      %20 = dma.hbm_to_vmem [thread:$0]  %s16, 128, %s18, [#allocation3]
    $region5: #{tpu_custom_call.1} parent=1 // pred_fallthru
      _
    // Predicated region
    $region6: #{tpu_custom_call.1} parent=1 // pred_check
      _
    $region7: #{tpu_custom_call.1} parent=1 // pred_check_branch
      %22 = sbr.rel (0) target = $region9
    $region8: #{tpu_custom_call.1} parent=1 // pred_region
      %24 = vsyncadd [#allocation6], 0
      %s25 = sshll.u32 %s1, 4
      %s26 = int_to_ptr.hbm [resolvable:$true] %s25
      %s27 = sshll.u32 [#allocation5], 4
      %s28 = int_to_ptr.vmem [resolvable:$true] %s27
      %33 = dma.hbm_to_vmem [thread:$0]  %s26, 16384, %s28, [#allocation6], 128, 128, 8
    $region9: #{tpu_custom_call.1} parent=1 // pred_fallthru
      _
    // Predicated region
    $region10: #{tpu_custom_call.1} parent=1 // pred_check
      _
    $region11: #{tpu_custom_call.1} parent=1 // pred_check_branch
      %35 = sbr.rel (0) target = $region13
    $region12: #{tpu_custom_call.1} parent=1 // pred_region
      %37 = dma.done [#allocation3], 128
    $region13: #{tpu_custom_call.1} parent=1 // pred_fallthru
      _
    // Predicated region
    $region14: #{tpu_custom_call.1} parent=1 // pred_check
      _
    $region15: #{tpu_custom_call.1} parent=1 // pred_check_branch
      %39 = sbr.rel (0) target = $region17
    $region16: #{tpu_custom_call.1} parent=1 // pred_region
      %41 = dma.done [#allocation6], 16384
    $region17: #{tpu_custom_call.1} parent=1 // pred_fallthru
      _
    %v42 = vld [vmem:[#allocation2] sm:$0xff]
    %v43 = vld [vmem:[#allocation5] sm:$0xff]
    %v44 = vld [vmem:[#allocation5 + $0x8] sm:$0xff]
    %v45 = vld [vmem:[#allocation5 + $0x10] sm:$0xff]
    %v46 = vld [vmem:[#allocation5 + $0x18] sm:$0xff]
    %v47 = vld [vmem:[#allocation5 + $0x20] sm:$0xff]
    %v48 = vld [vmem:[#allocation5 + $0x28] sm:$0xff]
    %v49 = vld [vmem:[#allocation5 + $0x30] sm:$0xff]
    %v50 = vld [vmem:[#allocation5 + $0x38] sm:$0xff]
    %v51 = vld [vmem:[#allocation5 + $0x40] sm:$0xff]
    %v52 = vld [vmem:[#allocation5 + $0x48] sm:$0xff]
    %v53 = vld [vmem:[#allocation5 + $0x50] sm:$0xff]
    %v54 = vld [vmem:[#allocation5 + $0x58] sm:$0xff]
    %v55 = vld [vmem:[#allocation5 + $0x60] sm:$0xff]
    %v56 = vld [vmem:[#allocation5 + $0x68] sm:$0xff]
    %v57 = vld [vmem:[#allocation5 + $0x70] sm:$0xff]
    %v58 = vld [vmem:[#allocation5 + $0x78] sm:$0xff]
    %59 = vmatpush.msra.mxu0 %v58
    %60 = vmatpush.msra.mxu0 %v57
    %61 = vmatpush.msra.mxu0 %v56
    %62 = vmatpush.msra.mxu0 %v55
    %63 = vmatpush.msra.mxu0 %v54
    %64 = vmatpush.msra.mxu0 %v53
    %65 = vmatpush.msra.mxu0 %v52
    %66 = vmatpush.msra.mxu0 %v51
    %67 = vmatpush.msra.mxu0 %v50
    %68 = vmatpush.msra.mxu0 %v49
    %69 = vmatpush.msra.mxu0 %v48
    %70 = vmatpush.msra.mxu0 %v47
    %71 = vmatpush.msra.mxu0 %v46
    %72 = vmatpush.msra.mxu0 %v45
    %73 = vmatpush.msra.mxu0 %v44
    %74 = vmatpush.msra.mxu0 %v43
    %75 = vmatmul.f32.gmra.mxu0 %v42
    %v76 = vpop.f32.mrf.mxu0
    %v77 = vadd.f32 0.0, %v76
    %78 = vdwg.mxu0
    %v79 = vmax.f32 %v77, 0.0
    %s80 = scalar_lea.vmem [#allocation5], 128
    %v81 = vld [vmem:[%s80] sm:$0xff]
    %v82 = vld [vmem:[%s80 + $0x8] sm:$0xff]
    %v83 = vld [vmem:[%s80 + $0x10] sm:$0xff]
    %v84 = vld [vmem:[%s80 + $0x18] sm:$0xff]
    %v85 = vld [vmem:[%s80 + $0x20] sm:$0xff]
    %v86 = vld [vmem:[%s80 + $0x28] sm:$0xff]
    %v87 = vld [vmem:[%s80 + $0x30] sm:$0xff]
    %v88 = vld [vmem:[%s80 + $0x38] sm:$0xff]
    %v89 = vld [vmem:[%s80 + $0x40] sm:$0xff]
    %v90 = vld [vmem:[%s80 + $0x48] sm:$0xff]
    %v91 = vld [vmem:[%s80 + $0x50] sm:$0xff]
    %v92 = vld [vmem:[%s80 + $0x58] sm:$0xff]
    %v93 = vld [vmem:[%s80 + $0x60] sm:$0xff]
    %v94 = vld [vmem:[%s80 + $0x68] sm:$0xff]
    %v95 = vld [vmem:[%s80 + $0x70] sm:$0xff]
    %v96 = vld [vmem:[%s80 + $0x78] sm:$0xff]
    %97 = vmatpush.msra.mxu0 %v96
    %98 = vmatpush.msra.mxu0 %v95
    %99 = vmatpush.msra.mxu0 %v94
    %100 = vmatpush.msra.mxu0 %v93
    %101 = vmatpush.msra.mxu0 %v92
    %102 = vmatpush.msra.mxu0 %v91
    %103 = vmatpush.msra.mxu0 %v90
    %104 = vmatpush.msra.mxu0 %v89
    %105 = vmatpush.msra.mxu0 %v88
    %106 = vmatpush.msra.mxu0 %v87
    %107 = vmatpush.msra.mxu0 %v86
    %108 = vmatpush.msra.mxu0 %v85
    %109 = vmatpush.msra.mxu0 %v84
    %110 = vmatpush.msra.mxu0 %v83
    %111 = vmatpush.msra.mxu0 %v82
    %112 = vmatpush.msra.mxu0 %v81
    %113 = vmatmul.f32.gmra.mxu0 %v79
    %v114 = vpop.f32.mrf.mxu0
    %v115 = vadd.f32 0.0, %v114
    %116 = vdwg.mxu0
    %v117 = vmax.f32 %v115, 0.0
    %s118 = scalar_lea.vmem [#allocation5], 256
    %v119 = vld [vmem:[%s118] sm:$0xff]
    %v120 = vld [vmem:[%s118 + $0x8] sm:$0xff]
    %v121 = vld [vmem:[%s118 + $0x10] sm:$0xff]
    %v122 = vld [vmem:[%s118 + $0x18] sm:$0xff]
    %v123 = vld [vmem:[%s118 + $0x20] sm:$0xff]
    %v124 = vld [vmem:[%s118 + $0x28] sm:$0xff]
    %v125 = vld [vmem:[%s118 + $0x30] sm:$0xff]
    %v126 = vld [vmem:[%s118 + $0x38] sm:$0xff]
    %v127 = vld [vmem:[%s118 + $0x40] sm:$0xff]
    %v128 = vld [vmem:[%s118 + $0x48] sm:$0xff]
    %v129 = vld [vmem:[%s118 + $0x50] sm:$0xff]
    %v130 = vld [vmem:[%s118 + $0x58] sm:$0xff]
    %v131 = vld [vmem:[%s118 + $0x60] sm:$0xff]
    %v132 = vld [vmem:[%s118 + $0x68] sm:$0xff]
    %v133 = vld [vmem:[%s118 + $0x70] sm:$0xff]
    %v134 = vld [vmem:[%s118 + $0x78] sm:$0xff]
    %135 = vmatpush.msra.mxu0 %v134
    %136 = vmatpush.msra.mxu0 %v133
    %137 = vmatpush.msra.mxu0 %v132
    %138 = vmatpush.msra.mxu0 %v131
    %139 = vmatpush.msra.mxu0 %v130
    %140 = vmatpush.msra.mxu0 %v129
    %141 = vmatpush.msra.mxu0 %v128
    %142 = vmatpush.msra.mxu0 %v127
    %143 = vmatpush.msra.mxu0 %v126
    %144 = vmatpush.msra.mxu0 %v125
    %145 = vmatpush.msra.mxu0 %v124
    %146 = vmatpush.msra.mxu0 %v123
    %147 = vmatpush.msra.mxu0 %v122
    %148 = vmatpush.msra.mxu0 %v121
    %149 = vmatpush.msra.mxu0 %v120
    %150 = vmatpush.msra.mxu0 %v119
    %151 = vmatmul.f32.gmra.mxu0 %v117
    %v152 = vpop.f32.mrf.mxu0
    %v153 = vadd.f32 0.0, %v152
    %154 = vdwg.mxu0
    %s155 = scalar_lea.vmem [#allocation5], 384
    %v156 = vld [vmem:[%s155] sm:$0xff]
    %v157 = vld [vmem:[%s155 + $0x8] sm:$0xff]
    %v158 = vld [vmem:[%s155 + $0x10] sm:$0xff]
    %v159 = vld [vmem:[%s155 + $0x18] sm:$0xff]
    %v160 = vld [vmem:[%s155 + $0x20] sm:$0xff]
    %v161 = vld [vmem:[%s155 + $0x28] sm:$0xff]
    %v162 = vld [vmem:[%s155 + $0x30] sm:$0xff]
    %v163 = vld [vmem:[%s155 + $0x38] sm:$0xff]
    %v164 = vld [vmem:[%s155 + $0x40] sm:$0xff]
    %v165 = vld [vmem:[%s155 + $0x48] sm:$0xff]
    %v166 = vld [vmem:[%s155 + $0x50] sm:$0xff]
    %v167 = vld [vmem:[%s155 + $0x58] sm:$0xff]
    %v168 = vld [vmem:[%s155 + $0x60] sm:$0xff]
    %v169 = vld [vmem:[%s155 + $0x68] sm:$0xff]
    %v170 = vld [vmem:[%s155 + $0x70] sm:$0xff]
    %v171 = vld [vmem:[%s155 + $0x78] sm:$0xff]
    %172 = vmatpush.msra.mxu0 %v171
    %173 = vmatpush.msra.mxu0 %v170
    %174 = vmatpush.msra.mxu0 %v169
    %175 = vmatpush.msra.mxu0 %v168
    %176 = vmatpush.msra.mxu0 %v167
    %177 = vmatpush.msra.mxu0 %v166
    %178 = vmatpush.msra.mxu0 %v165
    %179 = vmatpush.msra.mxu0 %v164
    %180 = vmatpush.msra.mxu0 %v163
    %181 = vmatpush.msra.mxu0 %v162
    %182 = vmatpush.msra.mxu0 %v161
    %183 = vmatpush.msra.mxu0 %v160
    %184 = vmatpush.msra.mxu0 %v159
    %185 = vmatpush.msra.mxu0 %v158
    %186 = vmatpush.msra.mxu0 %v157
    %187 = vmatpush.msra.mxu0 %v156
    %188 = vmatmul.f32.gmra.mxu0 %v153
    %v189 = vpop.f32.mrf.mxu0
    %v190 = vadd.f32 0.0, %v189
    %191 = vdwg.mxu0
    %v192 = vmax.f32 %v190, 0.0
    %s193 = scalar_lea.vmem [#allocation5], 512
    %v194 = vld [vmem:[%s193] sm:$0xff]
    %v195 = vld [vmem:[%s193 + $0x8] sm:$0xff]
    %v196 = vld [vmem:[%s193 + $0x10] sm:$0xff]
    %v197 = vld [vmem:[%s193 + $0x18] sm:$0xff]
    %v198 = vld [vmem:[%s193 + $0x20] sm:$0xff]
    %v199 = vld [vmem:[%s193 + $0x28] sm:$0xff]
    %v200 = vld [vmem:[%s193 + $0x30] sm:$0xff]
    %v201 = vld [vmem:[%s193 + $0x38] sm:$0xff]
    %v202 = vld [vmem:[%s193 + $0x40] sm:$0xff]
    %v203 = vld [vmem:[%s193 + $0x48] sm:$0xff]
    %v204 = vld [vmem:[%s193 + $0x50] sm:$0xff]
    %v205 = vld [vmem:[%s193 + $0x58] sm:$0xff]
    %v206 = vld [vmem:[%s193 + $0x60] sm:$0xff]
    %v207 = vld [vmem:[%s193 + $0x68] sm:$0xff]
    %v208 = vld [vmem:[%s193 + $0x70] sm:$0xff]
    %v209 = vld [vmem:[%s193 + $0x78] sm:$0xff]
    %210 = vmatpush.msra.mxu0 %v209
    %211 = vmatpush.msra.mxu0 %v208
    %212 = vmatpush.msra.mxu0 %v207
    %213 = vmatpush.msra.mxu0 %v206
    %214 = vmatpush.msra.mxu0 %v205
    %215 = vmatpush.msra.mxu0 %v204
    %216 = vmatpush.msra.mxu0 %v203
    %217 = vmatpush.msra.mxu0 %v202
    %218 = vmatpush.msra.mxu0 %v201
    %219 = vmatpush.msra.mxu0 %v200
    %220 = vmatpush.msra.mxu0 %v199
    %221 = vmatpush.msra.mxu0 %v198
    %222 = vmatpush.msra.mxu0 %v197
    %223 = vmatpush.msra.mxu0 %v196
    %224 = vmatpush.msra.mxu0 %v195
    %225 = vmatpush.msra.mxu0 %v194
    %226 = vmatmul.f32.gmra.mxu0 %v192
    %v227 = vpop.f32.mrf.mxu0
    %v228 = vadd.f32 0.0, %v227
    %229 = vdwg.mxu0
    %v230 = vmax.f32 %v228, 0.0
    %s231 = scalar_lea.vmem [#allocation5], 640
    %v232 = vld [vmem:[%s231] sm:$0xff]
    %v233 = vld [vmem:[%s231 + $0x8] sm:$0xff]
    %v234 = vld [vmem:[%s231 + $0x10] sm:$0xff]
    %v235 = vld [vmem:[%s231 + $0x18] sm:$0xff]
    %v236 = vld [vmem:[%s231 + $0x20] sm:$0xff]
    %v237 = vld [vmem:[%s231 + $0x28] sm:$0xff]
    %v238 = vld [vmem:[%s231 + $0x30] sm:$0xff]
    %v239 = vld [vmem:[%s231 + $0x38] sm:$0xff]
    %v240 = vld [vmem:[%s231 + $0x40] sm:$0xff]
    %v241 = vld [vmem:[%s231 + $0x48] sm:$0xff]
    %v242 = vld [vmem:[%s231 + $0x50] sm:$0xff]
    %v243 = vld [vmem:[%s231 + $0x58] sm:$0xff]
    %v244 = vld [vmem:[%s231 + $0x60] sm:$0xff]
    %v245 = vld [vmem:[%s231 + $0x68] sm:$0xff]
    %v246 = vld [vmem:[%s231 + $0x70] sm:$0xff]
    %v247 = vld [vmem:[%s231 + $0x78] sm:$0xff]
    %248 = vmatpush.msra.mxu0 %v247
    %249 = vmatpush.msra.mxu0 %v246
    %250 = vmatpush.msra.mxu0 %v245
    %251 = vmatpush.msra.mxu0 %v244
    %252 = vmatpush.msra.mxu0 %v243
    %253 = vmatpush.msra.mxu0 %v242
    %254 = vmatpush.msra.mxu0 %v241
    %255 = vmatpush.msra.mxu0 %v240
    %256 = vmatpush.msra.mxu0 %v239
    %257 = vmatpush.msra.mxu0 %v238
    %258 = vmatpush.msra.mxu0 %v237
    %259 = vmatpush.msra.mxu0 %v236
    %260 = vmatpush.msra.mxu0 %v235
    %261 = vmatpush.msra.mxu0 %v234
    %262 = vmatpush.msra.mxu0 %v233
    %263 = vmatpush.msra.mxu0 %v232
    %264 = vmatmul.f32.gmra.mxu0 %v230
    %v265 = vpop.f32.mrf.mxu0
    %v266 = vadd.f32 0.0, %v265
    %267 = vdwg.mxu0
    %s268 = scalar_lea.vmem [#allocation5], 768
    %v269 = vld [vmem:[%s268] sm:$0xff]
    %v270 = vld [vmem:[%s268 + $0x8] sm:$0xff]
    %v271 = vld [vmem:[%s268 + $0x10] sm:$0xff]
    %v272 = vld [vmem:[%s268 + $0x18] sm:$0xff]
    %v273 = vld [vmem:[%s268 + $0x20] sm:$0xff]
    %v274 = vld [vmem:[%s268 + $0x28] sm:$0xff]
    %v275 = vld [vmem:[%s268 + $0x30] sm:$0xff]
    %v276 = vld [vmem:[%s268 + $0x38] sm:$0xff]
    %v277 = vld [vmem:[%s268 + $0x40] sm:$0xff]
    %v278 = vld [vmem:[%s268 + $0x48] sm:$0xff]
    %v279 = vld [vmem:[%s268 + $0x50] sm:$0xff]
    %v280 = vld [vmem:[%s268 + $0x58] sm:$0xff]
    %v281 = vld [vmem:[%s268 + $0x60] sm:$0xff]
    %v282 = vld [vmem:[%s268 + $0x68] sm:$0xff]
    %v283 = vld [vmem:[%s268 + $0x70] sm:$0xff]
    %v284 = vld [vmem:[%s268 + $0x78] sm:$0xff]
    %285 = vmatpush.msra.mxu0 %v284
    %286 = vmatpush.msra.mxu0 %v283
    %287 = vmatpush.msra.mxu0 %v282
    %288 = vmatpush.msra.mxu0 %v281
    %289 = vmatpush.msra.mxu0 %v280
    %290 = vmatpush.msra.mxu0 %v279
    %291 = vmatpush.msra.mxu0 %v278
    %292 = vmatpush.msra.mxu0 %v277
    %293 = vmatpush.msra.mxu0 %v276
    %294 = vmatpush.msra.mxu0 %v275
    %295 = vmatpush.msra.mxu0 %v274
    %296 = vmatpush.msra.mxu0 %v273
    %297 = vmatpush.msra.mxu0 %v272
    %298 = vmatpush.msra.mxu0 %v271
    %299 = vmatpush.msra.mxu0 %v270
    %300 = vmatpush.msra.mxu0 %v269
    %301 = vmatmul.f32.gmra.mxu0 %v266
    %v302 = vpop.f32.mrf.mxu0
    %v303 = vadd.f32 0.0, %v302
    %304 = vdwg.mxu0
    %v305 = vmax.f32 %v303, 0.0
    %s306 = scalar_lea.vmem [#allocation5], 896
    %v307 = vld [vmem:[%s306] sm:$0xff]
    %v308 = vld [vmem:[%s306 + $0x8] sm:$0xff]
    %v309 = vld [vmem:[%s306 + $0x10] sm:$0xff]
    %v310 = vld [vmem:[%s306 + $0x18] sm:$0xff]
    %v311 = vld [vmem:[%s306 + $0x20] sm:$0xff]
    %v312 = vld [vmem:[%s306 + $0x28] sm:$0xff]
    %v313 = vld [vmem:[%s306 + $0x30] sm:$0xff]
    %v314 = vld [vmem:[%s306 + $0x38] sm:$0xff]
    %v315 = vld [vmem:[%s306 + $0x40] sm:$0xff]
    %v316 = vld [vmem:[%s306 + $0x48] sm:$0xff]
    %v317 = vld [vmem:[%s306 + $0x50] sm:$0xff]
    %v318 = vld [vmem:[%s306 + $0x58] sm:$0xff]
    %v319 = vld [vmem:[%s306 + $0x60] sm:$0xff]
    %v320 = vld [vmem:[%s306 + $0x68] sm:$0xff]
    %v321 = vld [vmem:[%s306 + $0x70] sm:$0xff]
    %v322 = vld [vmem:[%s306 + $0x78] sm:$0xff]
    %323 = vmatpush.msra.mxu0 %v322
    %324 = vmatpush.msra.mxu0 %v321
    %325 = vmatpush.msra.mxu0 %v320
    %326 = vmatpush.msra.mxu0 %v319
    %327 = vmatpush.msra.mxu0 %v318
    %328 = vmatpush.msra.mxu0 %v317
    %329 = vmatpush.msra.mxu0 %v316
    %330 = vmatpush.msra.mxu0 %v315
    %331 = vmatpush.msra.mxu0 %v314
    %332 = vmatpush.msra.mxu0 %v313
    %333 = vmatpush.msra.mxu0 %v312
    %334 = vmatpush.msra.mxu0 %v311
    %335 = vmatpush.msra.mxu0 %v310
    %336 = vmatpush.msra.mxu0 %v309
    %337 = vmatpush.msra.mxu0 %v308
    %338 = vmatpush.msra.mxu0 %v307
    %339 = vmatmul.f32.gmra.mxu0 %v305
    %v340 = vpop.f32.mrf.mxu0
    %v341 = vadd.f32 0.0, %v340
    %342 = vdwg.mxu0
    %343 = vst [vmem:[#allocation7] sm:$0xff] %v341
    // Predicated region
    $region18: #{tpu_custom_call.1} parent=1 // pred_check
      _
    $region19: #{tpu_custom_call.1} parent=1 // pred_check_branch
      %345 = sbr.rel (0) target = $region21
    $region20: #{tpu_custom_call.1} parent=1 // pred_region
      %347 = vsyncadd [#allocation4], 0
      %s349 = sshll.u32 [#allocation7], 4
      %s350 = int_to_ptr.vmem [resolvable:$true] %s349
      %s351 = sshll.u32 %s2, 4
      %s352 = int_to_ptr.hbm [resolvable:$true] %s351
      %354 = dma.vmem_to_hbm [thread:$0]  %s350, 128, %s352, [#allocation4]
    $region21: #{tpu_custom_call.1} parent=1 // pred_fallthru
      _
    // Predicated region
    $region22: #{tpu_custom_call.1} parent=1 // pred_check
      _
    $region23: #{tpu_custom_call.1} parent=1 // pred_check_branch
      %356 = sbr.rel (0) target = $region25
    $region24: #{tpu_custom_call.1} parent=1 // pred_region
      %358 = dma.done [#allocation4], 128
    $region25: #{tpu_custom_call.1} parent=1 // pred_fallthru
      _
    %359 = vsyncpa [#allocation3], 1
    %360 = vsyncpa [#allocation6], 1
    %361 = vsyncpa [#allocation4], 1

</llo_original>
